<compile_context>
chip_gen: v6e
topology: v6e:2x2x1
jax: 0.10.0
libtpu: 0.0.40
codegen_flags: <defaults>
</compile_context>

<pallas_src>
import functools

import jax
import jax.numpy as jnp
from jax.experimental import pallas as pl
from jax.experimental.pallas import tpu as pltpu


def _gated_conv_kernel(xt_ref, wt_ref, b_ref, o_ref, *, cout, neg_slope):
    """One grid step = one TM-wide column tile of the (Cout, M) output slab.

    xt_ref : (Kpad, TM)     bf16  im2col patches (K on sublanes, M on lanes)
    wt_ref : (2*cout, Kpad) bf16  fused [image ; mask] weights
    b_ref  : (2*cout, 1)    f32   fused biases
    o_ref  : (cout, TM)     f32   gated output tile (lane-dense)
    """
    # Single fused MXU matmul, f32 accumulation.
    p = jnp.dot(wt_ref[...], xt_ref[...],
                preferred_element_type=jnp.float32)          # (2*cout, TM) f32
    p = p + b_ref[...]                                       # lane-broadcast bias

    img = p[:cout, :]                                        # sublane-tile aligned slices
    msk = p[cout:, :]

    act = jnp.where(img >= 0.0, img, neg_slope * img)        # LeakyReLU(0.2), f32
    gate = jax.nn.sigmoid(msk)                                # f32 (EUP)
    o_ref[...] = (act * gate).astype(o_ref.dtype)             # dense store


def _pick_tile(m):
    """Largest multiple of 128 that divides m and gives a grid of >= 2."""
    for cand in range(m // 2, 127, -1):
        if m % cand == 0 and cand % 128 == 0:
            return cand
    return m  # fallback: single grid step, block == full array (still legal)


def gated_conv2d(x_nchw, w_img, b_img, w_msk, b_msk, *,
                 stride=1, padding=1, dilation=1, neg_slope=0.2):
    """x_nchw: (B, Cin, H, W); weights in PyTorch layout (Cout, Cin, KH, KW)."""
    assert stride == 1 and dilation == 1, "only stride=1, dilation=1 supported"

    B, Cin, H, W = x_nchw.shape
    Cout, _, KH, KW = w_img.shape
    OH = H + 2 * padding - KH + 1
    OW = W + 2 * padding - KW + 1
    M = B * OH * OW
    Kdim = KH * KW * Cin
    Kpad = ((Kdim + 127) // 128) * 128

    # ---- wrapper-side repack (plain XLA glue) -------------------------------
    # NCHW -> NHWC, zero-pad spatial dims.
    x = jnp.transpose(x_nchw, (0, 2, 3, 1)).astype(jnp.float32)
    x = jnp.pad(x, ((0, 0), (padding, padding), (padding, padding), (0, 0)))

    # Transposed im2col: rows = (kh, kw, ci), cols = (b, oh, ow) = M (lane axis).
    pats = jnp.stack(
        [x[:, kh:kh + OH, kw:kw + OW, :] for kh in range(KH) for kw in range(KW)],
        axis=0)                                                # (KH*KW, B, OH, OW, Cin)
    xt = jnp.transpose(pats, (0, 4, 1, 2, 3)).reshape(Kdim, M)
    xt = jnp.pad(xt, ((0, Kpad - Kdim), (0, 0))).astype(jnp.bfloat16)   # (Kpad, M)

    # Fused [image ; mask] weights: (Cout,Cin,KH,KW) -> (Kdim, Cout), concat on Cout,
    # pad K, transpose to (2*Cout, Kpad).  K ordering matches xt: (kh, kw, ci).
    def repack(w):
        return jnp.transpose(w, (2, 3, 1, 0)).reshape(Kdim, Cout).astype(jnp.float32)

    w_cat = jnp.concatenate([repack(w_img), repack(w_msk)], axis=1)      # (Kdim, 2*Cout)
    wt = jnp.pad(w_cat, ((0, Kpad - Kdim), (0, 0))).T.astype(jnp.bfloat16)  # (2*Cout, Kpad)
    b_cat = jnp.concatenate([b_img, b_msk]).reshape(2 * Cout, 1).astype(jnp.float32)

    # ---- Pallas call --------------------------------------------------------
    TM = _pick_tile(M)
    grid = (M // TM,)

    kernel = functools.partial(_gated_conv_kernel, cout=Cout, neg_slope=neg_slope)

    out_slab = pl.pallas_call(
        kernel,
        out_shape=jax.ShapeDtypeStruct((Cout, M), jnp.float32),
        grid=grid,
        in_specs=[
            pl.BlockSpec((Kpad, TM), lambda i: (0, i)),
            pl.BlockSpec((2 * Cout, Kpad), lambda i: (0, 0)),
            pl.BlockSpec((2 * Cout, 1), lambda i: (0, 0)),
        ],
        out_specs=pl.BlockSpec((Cout, TM), lambda i: (0, i)),
        compiler_params=pltpu.CompilerParams(
            dimension_semantics=("parallel",)),
    )(xt, wt, b_cat)

    # (Cout, B*OH*OW) -> (B, Cout, OH, OW) to match PyTorch output convention.
    return jnp.transpose(out_slab.reshape(Cout, B, OH, OW), (1, 0, 2, 3))


def _reference(x_nchw, w_img, b_img, w_msk, b_msk, *, padding=1, neg_slope=0.2):
    """Pure-JAX reference (lax conv) with bf16-rounded operands, f32 math."""
    x = jnp.transpose(x_nchw, (0, 2, 3, 1))
    x = x.astype(jnp.bfloat16).astype(jnp.float32)

    def conv(w, b):
        w_hwio = jnp.transpose(w, (2, 3, 1, 0))
        w_hwio = w_hwio.astype(jnp.bfloat16).astype(jnp.float32)
        y = jax.lax.conv_general_dilated(
            x, w_hwio, window_strides=(1, 1),
            padding=[(padding, padding), (padding, padding)],
            dimension_numbers=("NHWC", "HWIO", "NHWC"))
        return y + b.reshape(1, 1, 1, -1).astype(jnp.float32)

    img = conv(w_img, b_img)
    msk = conv(w_msk, b_msk)
    act = jnp.where(img >= 0, img, neg_slope * img)
    out = act * jax.nn.sigmoid(msk)
    return jnp.transpose(out, (0, 3, 1, 2))


if __name__ == "__main__":
    # Small shapes consistent with the module: B=2, Cin=4, Cout=8, 16x16, 3x3 conv, pad=1.
    B, Cin, Cout, H, W, K, PAD = 2, 4, 8, 16, 16, 3, 1

    key = jax.random.PRNGKey(0)
    k_x, k_wi, k_bi, k_wm, k_bm = jax.random.split(key, 5)

    x = jax.random.normal(k_x, (B, Cin, H, W), dtype=jnp.float32)

    # Xavier-normal weights (fan_in = Cin*K*K, fan_out = Cout*K*K), PyTorch-style uniform bias.
    fan_in = Cin * K * K
    fan_out = Cout * K * K
    std = (2.0 / (fan_in + fan_out)) ** 0.5
    bound = 1.0 / (fan_in ** 0.5)

    w_img = std * jax.random.normal(k_wi, (Cout, Cin, K, K), dtype=jnp.float32)
    b_img = jax.random.uniform(k_bi, (Cout,), minval=-bound, maxval=bound,
                               dtype=jnp.float32)
    w_msk = std * jax.random.normal(k_wm, (Cout, Cin, K, K), dtype=jnp.float32)
    b_msk = jax.random.uniform(k_bm, (Cout,), minval=-bound, maxval=bound,
                               dtype=jnp.float32)

    out = gated_conv2d(x, w_img, b_img, w_msk, b_msk, padding=PAD)
    out = jax.block_until_ready(out)

    ref = _reference(x, w_img, b_img, w_msk, b_msk, padding=PAD)
    assert out.shape == (B, Cout, H, W), out.shape
    assert jnp.allclose(out, ref, atol=2e-3, rtol=2e-3), \
        float(jnp.max(jnp.abs(out - ref)))

    print("KERNEL_OK")
</pallas_src>

<mosaic_0001>
module attributes {stable_mosaic.version = 11 : i64} {
  func.func @_gated_conv_kernel(%arg0: i32, %arg1: memref<128x256xbf16, #tpu.memory_space<vmem>>, %arg2: memref<16x128xbf16, #tpu.memory_space<vmem>>, %arg3: memref<16x1xf32, #tpu.memory_space<vmem>>, %arg4: memref<8x256xf32, #tpu.memory_space<vmem>>) attributes {dimension_semantics = [#tpu.dimension_semantics<parallel>], iteration_bounds = array<i64: 2>, scalar_prefetch = 0 : i64, scratch_operands = 0 : i64, tpu.core_type = #tpu.core_type<tc>, window_params = [{transform_indices = @transform_0, window_bounds = array<i64: 128, 256>}, {pipeline_mode = #tpu.pipeline_mode<synchronous>, transform_indices = @transform_1, window_bounds = array<i64: 16, 128>}, {pipeline_mode = #tpu.pipeline_mode<synchronous>, transform_indices = @transform_2, window_bounds = array<i64: 16, 1>}, {transform_indices = @transform_3, window_bounds = array<i64: 8, 256>}]} {
    %c0 = arith.constant 0 : index
    %c0_0 = arith.constant 0 : index
    %0 = vector.load %arg2[%c0, %c0_0] : memref<16x128xbf16, #tpu.memory_space<vmem>>, vector<16x128xbf16>
    %c0_1 = arith.constant 0 : index
    %c0_2 = arith.constant 0 : index
    %1 = vector.load %arg1[%c0_1, %c0_2] : memref<128x256xbf16, #tpu.memory_space<vmem>>, vector<128x256xbf16>
    %cst = arith.constant dense<0.000000e+00> : vector<16x256xf32>
    %2 = tpu.matmul %0, %1, %cst {dimension_numbers = #tpu.dot_dimension_numbers<[1], [0], [0], [1], [0, 0, 1, 1], [], []>} : vector<16x128xbf16>, vector<128x256xbf16>, vector<16x256xf32> -> vector<16x256xf32>
    %c0_3 = arith.constant 0 : index
    %c0_4 = arith.constant 0 : index
    %3 = vector.load %arg3[%c0_3, %c0_4] : memref<16x1xf32, #tpu.memory_space<vmem>>, vector<16x1xf32>
    %4 = vector.broadcast %3 : vector<16x1xf32> to vector<16x256xf32>
    %5 = arith.addf %2, %4 : vector<16x256xf32>
    %6 = vector.extract_strided_slice %5 {offsets = [0, 0], sizes = [8, 256], strides = [1, 1]} : vector<16x256xf32> to vector<8x256xf32>
    %7 = vector.extract_strided_slice %5 {offsets = [8, 0], sizes = [8, 256], strides = [1, 1]} : vector<16x256xf32> to vector<8x256xf32>
    %cst_5 = arith.constant 0.000000e+00 : f32
    %8 = vector.broadcast %cst_5 : f32 to vector<8x256xf32>
    %9 = arith.cmpf oge, %6, %8 : vector<8x256xf32>
    %cst_6 = arith.constant 2.000000e-01 : f32
    %10 = vector.broadcast %cst_6 : f32 to vector<8x256xf32>
    %11 = arith.mulf %10, %6 : vector<8x256xf32>
    %12 = arith.select %9, %6, %11 : vector<8x256xi1>, vector<8x256xf32>
    %13 = arith.negf %7 : vector<8x256xf32>
    %14 = math.exp %13 : vector<8x256xf32>
    %cst_7 = arith.constant 1.000000e+00 : f32
    %15 = vector.broadcast %cst_7 : f32 to vector<8x256xf32>
    %16 = arith.addf %15, %14 : vector<8x256xf32>
    %17 = arith.divf %15, %16 : vector<8x256xf32>
    %18 = arith.mulf %12, %17 : vector<8x256xf32>
    %c0_8 = arith.constant 0 : index
    %c0_9 = arith.constant 0 : index
    %19 = vector.load %arg4[%c0_8, %c0_9] : memref<8x256xf32, #tpu.memory_space<vmem>>, vector<8x256xf32>
    tpu.vector_store %arg4[%c0_8, %c0_9], %18 {strides = array<i32>} : memref<8x256xf32, #tpu.memory_space<vmem>>, vector<8x256xf32>,
    return
  }
  func.func @transform_0(%arg0: i32) -> (i32, i32) {
    %c0_i32 = arith.constant 0 : i32
    %c0_i32_0 = arith.constant 0 : i32
    return %c0_i32, %arg0 : i32, i32
  }
  func.func @transform_1(%arg0: i32) -> (i32, i32) {
    %c0_i32 = arith.constant 0 : i32
    %c0_i32_0 = arith.constant 0 : i32
    %c0_i32_1 = arith.constant 0 : i32
    return %c0_i32, %c0_i32_0 : i32, i32
  }
  func.func @transform_2(%arg0: i32) -> (i32, i32) {
    %c0_i32 = arith.constant 0 : i32
    %c0_i32_0 = arith.constant 0 : i32
    %c0_i32_1 = arith.constant 0 : i32
    return %c0_i32, %c0_i32_0 : i32, i32
  }
  func.func @transform_3(%arg0: i32) -> (i32, i32) {
    %c0_i32 = arith.constant 0 : i32
    %c0_i32_0 = arith.constant 0 : i32
    return %c0_i32, %arg0 : i32, i32
  }
}

</mosaic_0001>

<llo_original>
// kernel: tpu_custom_call.1
$region0: #{tpu_custom_call.1}
  #allocation0 [shape = 'u32[]', space=smem, size = 0x4, offset = 0x4, fixed_abs, tag = 'smem constant byte address 0x4 - core index']
  #allocation1 [shape = 'u32[144,128]{1,0:T(1,128)}', space=vmem, size = 0x12000, scoped, tag = 'internal scratch']
  %s0 = inlined_call_operand.hbm [shape: bf16[128,512], index: 0, kind: input, shape index: {}]
  %s1 = inlined_call_operand.vmem [shape: bf16[16,128], index: 1, kind: input, shape index: {}]
  %s2 = inlined_call_operand.vmem [shape: f32[16,1], index: 2, kind: input, shape index: {}]
  %s3 = inlined_call_operand.hbm [shape: f32[8,512], index: 3, kind: output, shape index: {}]
  %s4 = sld [smem:[#allocation0]]
  $region49: #{tpu_custom_call.1} parent=0
    _
  %s6 = ssub.s32 1, %s4
  %s7 = scalar_select 0, %s6, %s4
  $region1: #{tpu_custom_call.1} parent=0
    #allocation2 [shape = 'u8[131072]{0}', space=vmem, size = 0x20000, scoped, tag = 'input window, operand 0']
    #allocation3 [shape = 's32[2]{0}', space=sflag, size = 0x8, scoped, tag = 'scoped memory for tpu_custom_call.1']
    #allocation4 [shape = 's32[2]{0}', space=sflag, size = 0x8, scoped, tag = 'scoped memory for tpu_custom_call.1']
    #allocation5 [shape = 'u8[16384]{0}', space=vmem, size = 0x4000, scoped, tag = 'output window, operand 0']
    %8 = vsyncpa [#allocation3], 0
    %s9 = scalar_lea.sflag [#allocation3], 1
    %10 = vsyncpa %s9, 0
    %11 = vsyncpa [#allocation4], 0
    %s12 = scalar_lea.sflag [#allocation4], 1
    %13 = vsyncpa %s12, 0
    loop: start=0, step=1, limit=4
    $region2: #{tpu_custom_call.1} parent=1 // loop_pre_header
      _
    $region3: #{tpu_custom_call.1} parent=1 // loop_header
      %s15 = sphi 0, %s19
      %p16 = scmp.ge.s32.totalorder %s15, 4
      %s25 = sphi 0, %s27
      %s28 = sphi 0, %s25
      %s29 = sphi 0, %s28
      %s45 = sphi 0, %s29
      %s49 = sphi 0, %s49
      %s51 = sphi 0, %s49
      %s52 = sphi 0, %s51
      %s66 = sphi 0, %s52
      %s70 = sphi 0, %s70
      %s72 = sphi 0, %s70
      %s73 = sphi 0, %s72
      %s87 = sphi 0, %s73
      %s93 = sphi 0, %s95
      %s96 = sphi 0, %s93
      %s97 = sphi 0, %s96
      %s113 = sphi 0, %s97
    $region4: #{tpu_custom_call.1} parent=1 // loop_header_branch
      %18 = sbr.rel (%p16) target = $region8
    $region5: #{tpu_custom_call.1} parent=1 // loop_body
      %s20 = ssub.s32 %s15, 1
      %s21 = ssub.s32 %s15, 2
      %s22 = sadd.s32 %s15, 1
      %s23 = ssub.s32 %s15, %s22
      %p24 = scmp.eq.s32.totalorder %s23, 0
      %s26 = sadd.s32 %s25, 1
      %s27 = scalar_select %p24, %s25, %s26
      %p30 = pneg %p24
      %p31 = scmp.eq.s32.totalorder %s15, 1
      %p32 = por %p30, %p31
      %p33 = scmp.ne.s32.totalorder %s25, %s28
      %p34 = scmp.eq.s32.totalorder %s15, 0
      %p35 = por %p33, %p34
      %p36 = scmp.ne.s32.totalorder %s25, %s28
      %p37 = scmp.eq.s32.totalorder %s20, 1
      %p38 = por %p36, %p37
      %p39 = scmp.ne.s32.totalorder %s28, %s29
      %p40 = scmp.eq.s32.totalorder %s20, 0
      %p41 = por %p39, %p40
      %p42 = scmp.ne.s32.totalorder %s28, %s29
      %p43 = scmp.eq.s32.totalorder %s21, 1
      %p44 = por %p42, %p43
      %p46 = scmp.ne.s32.totalorder %s29, %s45
      %p47 = scmp.eq.s32.totalorder %s21, 0
      %p48 = por %p46, %p47
      %s50 = sadd.s32 %s49, 1
      %p53 = scmp.eq.s32.totalorder %s15, 1
      %p54 = scmp.ne.s32.totalorder %s49, %s51
      %p55 = scmp.eq.s32.totalorder %s15, 0
      %p56 = por %p54, %p55
      %p57 = scmp.ne.s32.totalorder %s49, %s51
      %p58 = scmp.eq.s32.totalorder %s20, 1
      %p59 = por %p57, %p58
      %p60 = scmp.ne.s32.totalorder %s51, %s52
      %p61 = scmp.eq.s32.totalorder %s20, 0
      %p62 = por %p60, %p61
      %p63 = scmp.ne.s32.totalorder %s51, %s52
      %p64 = scmp.eq.s32.totalorder %s21, 1
      %p65 = por %p63, %p64
      %p67 = scmp.ne.s32.totalorder %s52, %s66
      %p68 = scmp.eq.s32.totalorder %s21, 0
      %p69 = por %p67, %p68
      %s71 = sadd.s32 %s70, 1
      %p74 = scmp.eq.s32.totalorder %s15, 1
      %p75 = scmp.ne.s32.totalorder %s70, %s72
      %p76 = scmp.eq.s32.totalorder %s15, 0
      %p77 = por %p75, %p76
      %p78 = scmp.ne.s32.totalorder %s70, %s72
      %p79 = scmp.eq.s32.totalorder %s20, 1
      %p80 = por %p78, %p79
      %p81 = scmp.ne.s32.totalorder %s72, %s73
      %p82 = scmp.eq.s32.totalorder %s20, 0
      %p83 = por %p81, %p82
      %p84 = scmp.ne.s32.totalorder %s72, %s73
      %p85 = scmp.eq.s32.totalorder %s21, 1
      %p86 = por %p84, %p85
      %p88 = scmp.ne.s32.totalorder %s73, %s87
      %p89 = scmp.eq.s32.totalorder %s21, 0
      %p90 = por %p88, %p89
      %s91 = ssub.s32 %s15, %s22
      %p92 = scmp.eq.s32.totalorder %s91, 0
      %s94 = sadd.s32 %s93, 1
      %s95 = scalar_select %p92, %s93, %s94
      %p98 = pneg %p92
      %p99 = scmp.eq.s32.totalorder %s15, 1
      %p100 = por %p98, %p99
      %p101 = scmp.ne.s32.totalorder %s93, %s96
      %p102 = scmp.eq.s32.totalorder %s15, 0
      %p103 = por %p101, %p102
      %p104 = scmp.ne.s32.totalorder %s93, %s96
      %p105 = scmp.eq.s32.totalorder %s20, 1
      %p106 = por %p104, %p105
      %p107 = scmp.ne.s32.totalorder %s96, %s97
      %p108 = scmp.eq.s32.totalorder %s20, 0
      %p109 = por %p107, %p108
      %p110 = scmp.ne.s32.totalorder %s96, %s97
      %p111 = scmp.eq.s32.totalorder %s21, 1
      %p112 = por %p110, %p111
      %p114 = scmp.ne.s32.totalorder %s97, %s113
      %p115 = scmp.eq.s32.totalorder %s21, 0
      %p116 = por %p114, %p115
      %p117 = scmp.le.s32.totalorder 1, %s15
      %p118 = scmp.lt.s32.totalorder %s15, 3
      %p119 = pnand %p117, %p118
      %p120 = pneg %p119
      // Predicated region
      $region9: #{tpu_custom_call.1} parent=5 // pred_check
        _
      $region10: #{tpu_custom_call.1} parent=5 // pred_check_branch
        %122 = sbr.rel (%p119) target = $region12
      $region11: #{tpu_custom_call.1} parent=5 // pred_region
        %s123 = ssub.s32 %s15, 1
        // Predicated region
        $region13: #{tpu_custom_call.1} parent=11 // pred_check
          %p124 = pneg %p62
        $region14: #{tpu_custom_call.1} parent=11 // pred_check_branch
          %126 = sbr.rel (%p124) target = $region16
        $region15: #{tpu_custom_call.1} parent=11 // pred_region
          _
        $region16: #{tpu_custom_call.1} parent=11 // pred_fallthru
          _
        // Predicated region
        $region17: #{tpu_custom_call.1} parent=11 // pred_check
          %p127 = pneg %p83
        $region18: #{tpu_custom_call.1} parent=11 // pred_check_branch
          %129 = sbr.rel (%p127) target = $region20
        $region19: #{tpu_custom_call.1} parent=11 // pred_region
          _
        $region20: #{tpu_custom_call.1} parent=11 // pred_fallthru
          _
      $region12: #{tpu_custom_call.1} parent=5 // pred_fallthru
        _
      %p130 = scmp.lt.s32.totalorder %s15, 2
      // Predicated region
      $region21: #{tpu_custom_call.1} parent=5 // pred_check
        %p131 = pneg %p130
      $region22: #{tpu_custom_call.1} parent=5 // pred_check_branch
        %133 = sbr.rel (%p131) target = $region24
      $region23: #{tpu_custom_call.1} parent=5 // pred_region
        // Predicated region
        $region25: #{tpu_custom_call.1} parent=23 // pred_check
          %p134 = pneg %p35
        $region26: #{tpu_custom_call.1} parent=23 // pred_check_branch
          %136 = sbr.rel (%p134) target = $region28
        $region27: #{tpu_custom_call.1} parent=23 // pred_region
          %s137 = sand.u32 %s25, 1
          %s138 = scalar_lea.sflag [#allocation3], %s137
          %s139 = sand.u32 %s25, 1
          %s140 = smul.addr %s139, 128
          %s141 = scalar_lea.vmem [#allocation2], %s140
          %s142 = smul.u32 2, %s15
          %s144 = ssub.s32 2048, 2048
          %145 = vsyncadd %s138, %s144
          %s146 = smul.addr %s142, 64
          %s147 = scalar_lea.hbm %s0, %s146
          %s148 = sshll.u32 %s141, 4
          %s149 = int_to_ptr.vmem [resolvable:$true] %s148
          %154 = dma.hbm_to_vmem [thread:$0]  %s147, 2048, %s149, %s138, 256, 128, 8
        $region28: #{tpu_custom_call.1} parent=23 // pred_fallthru
          _
      $region24: #{tpu_custom_call.1} parent=5 // pred_fallthru
        _
      %p155 = scmp.le.s32.totalorder 1, %s15
      %p156 = scmp.lt.s32.totalorder %s15, 3
      %p157 = pnand %p155, %p156
      %p158 = pneg %p157
      // Predicated region
      $region29: #{tpu_custom_call.1} parent=5 // pred_check
        _
      $region30: #{tpu_custom_call.1} parent=5 // pred_check_branch
        %160 = sbr.rel (%p157) target = $region32
      $region31: #{tpu_custom_call.1} parent=5 // pred_region
        %s161 = ssub.s32 %s15, 1
        %s162 = sand.u32 %s28, 1
        %s163 = scalar_lea.sflag [#allocation3], %s162
        %s164 = sand.u32 %s28, 1
        %s165 = smul.addr %s164, 128
        %s166 = scalar_lea.vmem [#allocation2], %s165
        // Predicated region
        $region33: #{tpu_custom_call.1} parent=31 // pred_check
          %p167 = pneg %p41
        $region34: #{tpu_custom_call.1} parent=31 // pred_check_branch
          %169 = sbr.rel (%p167) target = $region36
        $region35: #{tpu_custom_call.1} parent=31 // pred_region
          %170 = dma.done %s163, 2048
        $region36: #{tpu_custom_call.1} parent=31 // pred_fallthru
          _
        %s171 = sand.u32 %s28, 1
        %s172 = scalar_lea.sflag [#allocation3], %s171
        %s173 = sand.u32 %s28, 1
        %s174 = smul.addr %s173, 128
        %s175 = scalar_lea.vmem [#allocation2], %s174
        %p176 = pneg %p41
        %p177 = pneg %p38
        %p178 = pneg %p62
        %p179 = pneg %p59
        %p180 = pneg %p83
        %p181 = pneg %p80
        %p182 = pneg %p109
        %p183 = pneg %p106
        %s184 = sand.u32 %s96, 1
        %s185 = scalar_lea.sflag [#allocation4], %s184
        %s186 = sand.u32 %s96, 1
        %s187 = smul.addr %s186, 16
        %s188 = scalar_lea.vmem [#allocation5], %s187
        %s189 = smul.u32 2, %s20
        %s190 = smul.u32 2, %s20
        %v192 = vld [vmem:[%s1] sm:$0xf]
        %v193 = vld [vmem:[%s1 + $0x4] sm:$0xf]
        %v194 = vld [vmem:[%s166] sm:$0xff]
        %v195 = vld [vmem:[%s166 + $0x8] sm:$0xff]
        %v196 = vld [vmem:[%s166 + $0x10] sm:$0xff]
        %v197 = vld [vmem:[%s166 + $0x18] sm:$0xff]
        %v198 = vld [vmem:[%s166 + $0x20] sm:$0xff]
        %v199 = vld [vmem:[%s166 + $0x28] sm:$0xff]
        %v200 = vld [vmem:[%s166 + $0x30] sm:$0xff]
        %v201 = vld [vmem:[%s166 + $0x38] sm:$0xff]
        %v202 = vld [vmem:[%s166 + $0x40] sm:$0xff]
        %v203 = vld [vmem:[%s166 + $0x48] sm:$0xff]
        %v204 = vld [vmem:[%s166 + $0x50] sm:$0xff]
        %v205 = vld [vmem:[%s166 + $0x58] sm:$0xff]
        %v206 = vld [vmem:[%s166 + $0x60] sm:$0xff]
        %v207 = vld [vmem:[%s166 + $0x68] sm:$0xff]
        %v208 = vld [vmem:[%s166 + $0x70] sm:$0xff]
        %v209 = vld [vmem:[%s166 + $0x78] sm:$0xff]
        %v210 = vld [vmem:[%s2] sm:$0xff]
        %v211 = vld [vmem:[%s2 + $0x8] sm:$0xff]
        %213 = vset.pattern.permute.xlu0 0
        %214 = vperm.xlu0 %213, %v210
        %v215 = vpop.permute.xlu0 %214
        %218 = vset.pattern.permute.xlu0 0
        %219 = vperm.xlu0 %218, %v211
        %v220 = vpop.permute.xlu0 %219
        %v224 = vunpack.c.l.b16 %v192
        %v225 = vunpack.c.l.b16 %v193
        %v226 = vpack.c.b16 %v225, %v224
        %v244 = vunpack.c.l.b16 %v194
        %v245 = vunpack.c.h.b16 %v194
        %v246 = vunpack.c.l.b16 %v195
        %v247 = vunpack.c.h.b16 %v195
        %v248 = vunpack.c.l.b16 %v196
        %v249 = vunpack.c.h.b16 %v196
        %v250 = vunpack.c.l.b16 %v197
        %v251 = vunpack.c.h.b16 %v197
        %v252 = vunpack.c.l.b16 %v198
        %v253 = vunpack.c.h.b16 %v198
        %v254 = vunpack.c.l.b16 %v199
        %v255 = vunpack.c.h.b16 %v199
        %v256 = vunpack.c.l.b16 %v200
        %v257 = vunpack.c.h.b16 %v200
        %v258 = vunpack.c.l.b16 %v201
        %v259 = vunpack.c.h.b16 %v201
        %v260 = vunpack.c.l.b16 %v202
        %v261 = vunpack.c.h.b16 %v202
        %v262 = vunpack.c.l.b16 %v203
        %v263 = vunpack.c.h.b16 %v203
        %v264 = vunpack.c.l.b16 %v204
        %v265 = vunpack.c.h.b16 %v204
        %v266 = vunpack.c.l.b16 %v205
        %v267 = vunpack.c.h.b16 %v205
        %v268 = vunpack.c.l.b16 %v206
        %v269 = vunpack.c.h.b16 %v206
        %v270 = vunpack.c.l.b16 %v207
        %v271 = vunpack.c.h.b16 %v207
        %v272 = vunpack.c.l.b16 %v208
        %v273 = vunpack.c.h.b16 %v208
        %v274 = vunpack.c.l.b16 %v209
        %v275 = vunpack.c.h.b16 %v209
        %v276 = vpack.c.b16 %v246, %v244
        %v277 = vpack.c.b16 %v247, %v245
        %v278 = vpack.c.b16 %v250, %v248
        %v279 = vpack.c.b16 %v251, %v249
        %v280 = vpack.c.b16 %v254, %v252
        %v281 = vpack.c.b16 %v255, %v253
        %v282 = vpack.c.b16 %v258, %v256
        %v283 = vpack.c.b16 %v259, %v257
        %v284 = vpack.c.b16 %v262, %v260
        %v285 = vpack.c.b16 %v263, %v261
        %v286 = vpack.c.b16 %v266, %v264
        %v287 = vpack.c.b16 %v267, %v265
        %v288 = vpack.c.b16 %v270, %v268
        %v289 = vpack.c.b16 %v271, %v269
        %v290 = vpack.c.b16 %v274, %v272
        %v291 = vpack.c.b16 %v275, %v273
        %308 = vmatprep.subr.bf16.mxu0 %v291
        %309 = vmatpush1.bf16.msra.mxu0 %v290
        %310 = vmatprep.subr.bf16.mxu0 %v289
        %311 = vmatpush1.bf16.msra.mxu0 %v288
        %312 = vmatprep.subr.bf16.mxu0 %v287
        %313 = vmatpush1.bf16.msra.mxu0 %v286
        %314 = vmatprep.subr.bf16.mxu0 %v285
        %315 = vmatpush1.bf16.msra.mxu0 %v284
        %316 = vmatprep.subr.bf16.mxu0 %v283
        %317 = vmatpush1.bf16.msra.mxu0 %v282
        %318 = vmatprep.subr.bf16.mxu0 %v281
        %319 = vmatpush1.bf16.msra.mxu0 %v280
        %320 = vmatprep.subr.bf16.mxu0 %v279
        %321 = vmatpush1.bf16.msra.mxu0 %v278
        %322 = vmatprep.subr.bf16.mxu0 %v277
        %323 = vmatpush1.bf16.msra.mxu0 %v276
        %324 = vmatprep.subr.bf16.mxu0 0
        %325 = vmatpush2.bf16.msra.mxu0 0
        %326 = vmatprep.subr.bf16.mxu0 0
        %327 = vmatpush2.bf16.msra.mxu0 0
        %328 = vmatprep.subr.bf16.mxu0 0
        %329 = vmatpush2.bf16.msra.mxu0 0
        %330 = vmatprep.subr.bf16.mxu0 0
        %331 = vmatpush2.bf16.msra.mxu0 0
        %332 = vmatprep.subr.bf16.mxu0 0
        %333 = vmatpush2.bf16.msra.mxu0 0
        %334 = vmatprep.subr.bf16.mxu0 0
        %335 = vmatpush2.bf16.msra.mxu0 0
        %336 = vmatprep.subr.bf16.mxu0 0
        %337 = vmatpush2.bf16.msra.mxu0 0
        %338 = vmatprep.subr.bf16.mxu0 0
        %339 = vmatpush2.bf16.msra.mxu0 0
        %340 = vmatprep.mubr.bf16.mxu0 0
        %341 = vmatmul.mubr.bf16.gmra.mxu0 %v226
        %v342 = vpop.f32.mrf.mxu0
        %v343 = vadd.f32 %v215, %v342
        %v344 = vpop.f32.mrf.mxu0
        %v345 = vadd.f32 %v215, %v344
        %v346 = vpop.f32.mrf.mxu0
        %v347 = vadd.f32 %v220, %v346
        %v348 = vpop.f32.mrf.mxu0
        %v349 = vadd.f32 %v220, %v348
        %350 = vdwg.mxu0
        %vm351 = vcmp.ge.f32.partialorder %v343, 0.0
        %vm352 = vcmp.ge.f32.partialorder %v345, 0.0
        %v353 = vmul.f32 %v343, 0.2
        %v354 = vmul.f32 %v345, 0.2
        %v355 = vsel %vm351, %v343, %v353
        %v356 = vsel %vm352, %v345, %v354
        %v357 = vxor.u32 %v347, 2147483648
        %v358 = vxor.u32 %v349, 2147483648
        %v359 = vmul.f32 %v357, 1.442695
        %v360 = vpow.pop %v359
        %v361 = vmul.f32 %v358, 1.442695
        %v362 = vpow.pop %v361
        %v363 = vadd.f32 %v360, 1.0
        %v364 = vadd.f32 %v362, 1.0
        %v365 = vrcp.pop %v363
        %v366 = vmul.f32 1.0, %v365
        %v367 = vrcp.pop %v364
        %v368 = vmul.f32 1.0, %v367
        %v369 = vmul.f32 %v355, %v366
        %v370 = vmul.f32 %v356, %v368
        %371 = vst [vmem:[%s188] sm:$0xff] %v369
        %372 = vst [vmem:[%s188 + $0x8] sm:$0xff] %v370
        %s373 = sand.u32 %s96, 1
        %s374 = scalar_lea.sflag [#allocation4], %s373
        %s375 = sand.u32 %s96, 1
        %s376 = smul.addr %s375, 16
        %s377 = scalar_lea.vmem [#allocation5], %s376
        // Predicated region
        $region37: #{tpu_custom_call.1} parent=31 // pred_check
          %p378 = pneg %p106
        $region38: #{tpu_custom_call.1} parent=31 // pred_check_branch
          %380 = sbr.rel (%p378) target = $region40
        $region39: #{tpu_custom_call.1} parent=31 // pred_region
          %s381 = smul.u32 2, %s20
          %s383 = ssub.s32 256, 256
          %384 = vsyncadd %s374, %s383
          %s385 = smul.addr %s381, 128
          %s386 = scalar_lea.hbm %s3, %s385
          %s388 = sshll.u32 %s377, 4
          %s389 = int_to_ptr.vmem [resolvable:$true] %s388
          %391 = dma.vmem_to_hbm [thread:$0]  %s389, 256, %s386, %s374
        $region40: #{tpu_custom_call.1} parent=31 // pred_fallthru
          _
      $region32: #{tpu_custom_call.1} parent=5 // pred_fallthru
        _
      %p392 = scmp.le.s32.totalorder 2, %s15
      // Predicated region
      $region41: #{tpu_custom_call.1} parent=5 // pred_check
        %p393 = pneg %p392
      $region42: #{tpu_custom_call.1} parent=5 // pred_check_branch
        %395 = sbr.rel (%p393) target = $region44
      $region43: #{tpu_custom_call.1} parent=5 // pred_region
        %s396 = ssub.s32 %s15, 2
        // Predicated region
        $region45: #{tpu_custom_call.1} parent=43 // pred_check
          %p397 = pneg %p112
        $region46: #{tpu_custom_call.1} parent=43 // pred_check_branch
          %399 = sbr.rel (%p397) target = $region48
        $region47: #{tpu_custom_call.1} parent=43 // pred_region
          %s400 = sand.u32 %s97, 1
          %s401 = scalar_lea.sflag [#allocation4], %s400
          %s402 = sand.u32 %s97, 1
          %s403 = smul.addr %s402, 16
          %s404 = scalar_lea.vmem [#allocation5], %s403
          %405 = dma.done %s401, 256
        $region48: #{tpu_custom_call.1} parent=43 // pred_fallthru
          _
      $region44: #{tpu_custom_call.1} parent=5 // pred_fallthru
        _
    $region6: #{tpu_custom_call.1} parent=1 // loop_footer
      %s19 = sadd.s32 1, %s15
    $region7: #{tpu_custom_call.1} parent=1 // loop_footer_branch
      %14 = sbr.rel target = $region3
    $region8: #{tpu_custom_call.1} parent=1 // loop_exit
      _
    %406 = vsyncpa [#allocation3], 1
    %s407 = scalar_lea.sflag [#allocation3], 1
    %408 = vsyncpa %s407, 1
    %409 = vsyncpa [#allocation4], 1
    %s410 = scalar_lea.sflag [#allocation4], 1
    %411 = vsyncpa %s410, 1

</llo_original>
